<compile_context>
chip_gen: v5e
topology: v5e:2x2
jax: 0.10.0
libtpu: 0.0.40
codegen_flags: <defaults>
</compile_context>

<pallas_src>
import jax
import jax.numpy as jnp
from jax.experimental import pallas as pl
from jax.experimental.pallas import tpu as pltpu


def make_positional_encoding_table(max_length: int, d_embedding: int) -> jnp.ndarray:
    """Deterministic pe table, identical to the PyTorch __init__ (float32)."""
    assert d_embedding % 2 == 0, "d_embedding must be even (sin/cos interleave)"
    pos = jnp.arange(0, max_length, dtype=jnp.float32)[:, None]          # [L, 1]
    emb = jnp.arange(0, d_embedding, 2, dtype=jnp.float32)[None, :]      # [1, D/2]
    inner = pos / jnp.power(10000.0, emb / d_embedding)                  # [L, D/2]
    pe = jnp.zeros((max_length, d_embedding), dtype=jnp.float32)
    pe = pe.at[:, 0::2].set(jnp.sin(inner))
    pe = pe.at[:, 1::2].set(jnp.cos(inner))
    return pe


def _add_pe_kernel(x_ref, pe_ref, o_ref):
    # x_ref / o_ref: (1, tile_rows, width); pe_ref: (tile_rows, width).
    # Same dtype everywhere (pe was cast in the wrapper) -> pure VPU add.
    o_ref[0] = (x_ref[0] + pe_ref[...]).astype(o_ref.dtype)


def _round_up(n: int, m: int) -> int:
    return ((n + m - 1) // m) * m


def _vmem_budget_and_limit() -> tuple[int, int]:
    """Generation-aware (budget_for_tiles, vmem_limit_bytes).

    128 MiB VMEM (v5e/v6e) -> 64 MiB limit / 48 MiB tile budget.
    64 MiB VMEM (v7x)      -> 32 MiB limit / 24 MiB tile budget.
    """
    cap = 64 * 1024 * 1024  # conservative fallback (v7x per-TC physical VMEM)
    try:
        info = pltpu.get_tpu_info()
        cap = int(getattr(info, "vmem_capacity_bytes", cap))
    except Exception:
        pass
    limit = min(cap // 2, 64 * 1024 * 1024)
    budget = (limit * 3) // 4  # headroom for compiler-internal scratch
    return budget, limit


def _choose_tile_rows(n_rows: int, bytes_per_row_all_operands: int,
                      vmem_budget_bytes: int, min_tiles: int = 1) -> int:
    """Row-tile size: multiple of 8, exact VMEM accounting
    (2 pipeline buffers x (x + pe + out) bytes per row), optionally capped so
    the grid has >= min_tiles steps (feeds both v7x TensorCores)."""
    rows_by_vmem = max(8, vmem_budget_bytes // (2 * bytes_per_row_all_operands))
    tile = min(rows_by_vmem, _round_up(n_rows, 8))
    if min_tiles > 1 and n_rows >= 8 * min_tiles:
        tile = min(tile, _round_up(pl.cdiv(n_rows, min_tiles), 8))
    return max(8, (tile // 8) * 8)


def positional_encoding_forward(x: jnp.ndarray, pe: jnp.ndarray, length: int) -> jnp.ndarray:
    """x: [length, d_embedding] or [batch, length, d_embedding];
    pe: [max_length, d_embedding] full table (sliced zero-copy via index_map).
    Returns x + pe[:length] in x.dtype."""
    squeeze = (x.ndim == 2)
    x3 = x[None] if squeeze else x
    B, L, D = x3.shape
    assert L == length, "length must match x.shape[-2] (static Python int)"
    max_length, D_pe = pe.shape
    assert D_pe == D and L <= max_length

    # Cast pe once in the wrapper (not per-element in the kernel).
    pe = pe.astype(x.dtype)
    itemsize = jnp.dtype(x.dtype).itemsize

    budget, vmem_limit = _vmem_budget_and_limit()

    # Lane-dense repack for narrow embeddings: free row-major reshapes, pe
    # prefix stays contiguous so index_map slicing still avoids materialization.
    lane_repack = (D % 128 != 0) and ((L * D) % 1024 == 0) and ((max_length * D) % 128 == 0)
    if lane_repack:
        n_rows, width = (L * D) // 128, 128
        x_k = x3.reshape(B, n_rows, width)
        pe_k = pe.reshape((max_length * D) // 128, width)
    else:
        n_rows, width = L, D
        x_k, pe_k = x3, pe

    bytes_per_row = width * itemsize * 3          # x + pe + out, per row, per stage
    min_tiles = 2 if B == 1 else 1                # ensure >=2 tiles for v7x megacore
    tile_rows = _choose_tile_rows(n_rows, bytes_per_row, budget, min_tiles)

    grid = (B, pl.cdiv(n_rows, tile_rows))

    x_spec = pl.BlockSpec((1, tile_rows, width), lambda b, i: (b, i, 0))
    pe_spec = pl.BlockSpec((tile_rows, width), lambda b, i: (i, 0))

    out = pl.pallas_call(
        _add_pe_kernel,
        out_shape=jax.ShapeDtypeStruct((B, n_rows, width), x.dtype),
        grid=grid,
        in_specs=[x_spec, pe_spec],
        out_specs=pl.BlockSpec((1, tile_rows, width), lambda b, i: (b, i, 0)),
        compiler_params=pltpu.CompilerParams(
            dimension_semantics=("parallel", "parallel"),
            vmem_limit_bytes=vmem_limit,
        ),
    )(x_k, pe_k)

    out = out.reshape(B, L, D)
    return out[0] if squeeze else out


if __name__ == "__main__":
    key = jax.random.PRNGKey(0)

    # --- Case 1: 2D float32 (matches the PyTorch forward signature) ---------
    max_length, d_embedding, length = 16, 32, 8
    pe = make_positional_encoding_table(max_length, d_embedding)
    k1, k2 = jax.random.split(key)
    x = jax.random.normal(k1, (length, d_embedding), dtype=jnp.float32)
    ref = x + pe[:length]
    out = jax.block_until_ready(positional_encoding_forward(x, pe, length))
    assert out.shape == (length, d_embedding)
    assert jnp.allclose(out, ref, atol=1e-6, rtol=1e-6)

    # --- Case 2: batched bf16 + lane-dense repack path (D=32 not 128-mult) --
    max_length2, d_embedding2, length2, batch = 64, 32, 32, 2
    pe2 = make_positional_encoding_table(max_length2, d_embedding2)
    xb = jax.random.normal(k2, (batch, length2, d_embedding2), dtype=jnp.float32)
    xb = xb.astype(jnp.bfloat16)
    ref2 = (xb.astype(jnp.float32)
            + pe2[:length2].astype(jnp.bfloat16).astype(jnp.float32)[None])
    out2 = jax.block_until_ready(positional_encoding_forward(xb, pe2, length2))
    assert out2.shape == (batch, length2, d_embedding2)
    assert out2.dtype == jnp.bfloat16
    assert jnp.allclose(out2.astype(jnp.float32), ref2, atol=5e-2, rtol=5e-2)

    print("KERNEL_OK")
</pallas_src>

<mosaic_0001>
module attributes {stable_mosaic.version = 11 : i64} {
  func.func @_add_pe_kernel(%arg0: i32, %arg1: i32, %arg2: memref<1x8x32xf32, #tpu.memory_space<vmem>>, %arg3: memref<8x32xf32, #tpu.memory_space<vmem>>, %arg4: memref<1x8x32xf32, #tpu.memory_space<vmem>>) attributes {dimension_semantics = [#tpu.dimension_semantics<parallel>, #tpu.dimension_semantics<parallel>], iteration_bounds = array<i64: 1, 1>, scalar_prefetch = 0 : i64, scratch_operands = 0 : i64, tpu.core_type = #tpu.core_type<tc>, window_params = [{transform_indices = @transform_0, window_bounds = array<i64: 1, 8, 32>}, {transform_indices = @transform_1, window_bounds = array<i64: 8, 32>}, {transform_indices = @transform_2, window_bounds = array<i64: 1, 8, 32>}]} {
    %c0 = arith.constant 0 : index
    %c0_0 = arith.constant 0 : index
    %c0_1 = arith.constant 0 : index
    %0 = vector.load %arg2[%c0, %c0_0, %c0_1] : memref<1x8x32xf32, #tpu.memory_space<vmem>>, vector<1x8x32xf32>
    %1 = vector.shape_cast %0 : vector<1x8x32xf32> to vector<8x32xf32>
    %c0_2 = arith.constant 0 : index
    %c0_3 = arith.constant 0 : index
    %2 = vector.load %arg3[%c0_2, %c0_3] : memref<8x32xf32, #tpu.memory_space<vmem>>, vector<8x32xf32>
    %3 = arith.addf %1, %2 : vector<8x32xf32>
    %c0_4 = arith.constant 0 : index
    %c0_5 = arith.constant 0 : index
    %c0_6 = arith.constant 0 : index
    %4 = vector.load %arg4[%c0_4, %c0_5, %c0_6] : memref<1x8x32xf32, #tpu.memory_space<vmem>>, vector<1x8x32xf32>
    %5 = vector.shape_cast %4 : vector<1x8x32xf32> to vector<8x32xf32>
    %6 = vector.shape_cast %3 : vector<8x32xf32> to vector<1x8x32xf32>
    tpu.vector_store %arg4[%c0_4, %c0_5, %c0_6], %6 {strides = array<i32>} : memref<1x8x32xf32, #tpu.memory_space<vmem>>, vector<1x8x32xf32>,
    return
  }
  func.func @transform_0(%arg0: i32, %arg1: i32) -> (i32, i32, i32) {
    %c0_i32 = arith.constant 0 : i32
    %c0_i32_0 = arith.constant 0 : i32
    return %arg0, %arg1, %c0_i32 : i32, i32, i32
  }
  func.func @transform_1(%arg0: i32, %arg1: i32) -> (i32, i32) {
    %c0_i32 = arith.constant 0 : i32
    %c0_i32_0 = arith.constant 0 : i32
    return %arg1, %c0_i32 : i32, i32
  }
  func.func @transform_2(%arg0: i32, %arg1: i32) -> (i32, i32, i32) {
    %c0_i32 = arith.constant 0 : i32
    %c0_i32_0 = arith.constant 0 : i32
    return %arg0, %arg1, %c0_i32 : i32, i32, i32
  }
}

</mosaic_0001>

<llo_original>
// kernel: tpu_custom_call.1
$region0: #{tpu_custom_call.1}
  #allocation0 [shape = 'u32[]', space=smem, size = 0x4, offset = 0x4, fixed_abs, tag = 'smem constant byte address 0x4 - core index']
  #allocation1 [shape = 'u32[72,128]{1,0:T(1,128)}', space=vmem, size = 0x9000, scoped, tag = 'internal scratch']
  %s0 = inlined_call_operand.hbm [shape: f32[1,8,32], index: 0, kind: input, shape index: {}]
  %s1 = inlined_call_operand.hbm [shape: f32[16,32], index: 1, kind: input, shape index: {}]
  %s2 = inlined_call_operand.hbm [shape: f32[1,8,32], index: 2, kind: output, shape index: {}]
  %s3 = sld [smem:[#allocation0]]
  $region26: #{tpu_custom_call.1} parent=0
    _
  %s5 = ssub.s32 1, %s3
  %s6 = scalar_select 0, %s5, %s3
  $region1: #{tpu_custom_call.1} parent=0
    #allocation2 [shape = 'u8[4096]{0}', space=vmem, size = 0x1000, scoped, tag = 'input window, operand 0, single buffered']
    #allocation3 [shape = 's32[1]{0}', space=sflag, size = 0x4, scoped, tag = 'scoped memory for tpu_custom_call.1']
    #allocation4 [shape = 's32[1]{0}', space=sflag, size = 0x4, scoped, tag = 'scoped memory for tpu_custom_call.1']
    #allocation5 [shape = 'u8[4096]{0}', space=vmem, size = 0x1000, scoped, tag = 'input window, operand 1, single buffered']
    #allocation6 [shape = 's32[1]{0}', space=sflag, size = 0x4, scoped, tag = 'scoped memory for tpu_custom_call.1']
    #allocation7 [shape = 'u8[4096]{0}', space=vmem, size = 0x1000, scoped, tag = 'output window, operand 0, single buffered']
    %7 = vsyncpa [#allocation3], 0
    %8 = vsyncpa [#allocation6], 0
    %9 = vsyncpa [#allocation4], 0
    // Predicated region
    $region2: #{tpu_custom_call.1} parent=1 // pred_check
      _
    $region3: #{tpu_custom_call.1} parent=1 // pred_check_branch
      %11 = sbr.rel (0) target = $region5
    $region4: #{tpu_custom_call.1} parent=1 // pred_region
      %13 = vsyncadd [#allocation3], 0
      %s15 = sshll.u32 %s0, 4
      %s16 = int_to_ptr.hbm [resolvable:$true] %s15
      %s17 = sshll.u32 [#allocation2], 4
      %s18 = int_to_ptr.vmem [resolvable:$true] %s17
      %20 = dma.hbm_to_vmem [thread:$0]  %s16, 128, %s18, [#allocation3]
    $region5: #{tpu_custom_call.1} parent=1 // pred_fallthru
      _
    // Predicated region
    $region6: #{tpu_custom_call.1} parent=1 // pred_check
      _
    $region7: #{tpu_custom_call.1} parent=1 // pred_check_branch
      %22 = sbr.rel (0) target = $region9
    $region8: #{tpu_custom_call.1} parent=1 // pred_region
      %24 = vsyncadd [#allocation6], 0
      %s26 = sshll.u32 %s1, 4
      %s27 = int_to_ptr.hbm [resolvable:$true] %s26
      %s28 = sshll.u32 [#allocation5], 4
      %s29 = int_to_ptr.vmem [resolvable:$true] %s28
      %31 = dma.hbm_to_vmem [thread:$0]  %s27, 128, %s29, [#allocation6]
    $region9: #{tpu_custom_call.1} parent=1 // pred_fallthru
      _
    // Predicated region
    $region10: #{tpu_custom_call.1} parent=1 // pred_check
      _
    $region11: #{tpu_custom_call.1} parent=1 // pred_check_branch
      %33 = sbr.rel (0) target = $region13
    $region12: #{tpu_custom_call.1} parent=1 // pred_region
      %35 = dma.done [#allocation3], 128
    $region13: #{tpu_custom_call.1} parent=1 // pred_fallthru
      _
    // Predicated region
    $region14: #{tpu_custom_call.1} parent=1 // pred_check
      _
    $region15: #{tpu_custom_call.1} parent=1 // pred_check_branch
      %37 = sbr.rel (0) target = $region17
    $region16: #{tpu_custom_call.1} parent=1 // pred_region
      %39 = dma.done [#allocation6], 128
    $region17: #{tpu_custom_call.1} parent=1 // pred_fallthru
      _
    %v40 = vld [vmem:[#allocation2] sm:$0xff]
    %v41 = vld [vmem:[#allocation5] sm:$0xff]
    %v42 = vadd.f32 %v40, %v41
    %vm43 = vcmask 261120
    %44 = vst.msk [vmem:[#allocation7] sm:$0xff] %vm43, %v42
    // Predicated region
    $region18: #{tpu_custom_call.1} parent=1 // pred_check
      _
    $region19: #{tpu_custom_call.1} parent=1 // pred_check_branch
      %46 = sbr.rel (0) target = $region21
    $region20: #{tpu_custom_call.1} parent=1 // pred_region
      %48 = vsyncadd [#allocation4], 0
      %s50 = sshll.u32 [#allocation7], 4
      %s51 = int_to_ptr.vmem [resolvable:$true] %s50
      %s52 = sshll.u32 %s2, 4
      %s53 = int_to_ptr.hbm [resolvable:$true] %s52
      %55 = dma.vmem_to_hbm [thread:$0]  %s51, 128, %s53, [#allocation4]
    $region21: #{tpu_custom_call.1} parent=1 // pred_fallthru
      _
    // Predicated region
    $region22: #{tpu_custom_call.1} parent=1 // pred_check
      _
    $region23: #{tpu_custom_call.1} parent=1 // pred_check_branch
      %57 = sbr.rel (0) target = $region25
    $region24: #{tpu_custom_call.1} parent=1 // pred_region
      %59 = dma.done [#allocation4], 128
    $region25: #{tpu_custom_call.1} parent=1 // pred_fallthru
      _
    %60 = vsyncpa [#allocation3], 1
    %61 = vsyncpa [#allocation6], 1
    %62 = vsyncpa [#allocation4], 1

</llo_original>
